<compile_context>
chip_gen: v7x
topology: tpu7x:2x2x1
jax: 0.10.0
libtpu: 0.0.40
codegen_flags: <defaults>
</compile_context>

<pallas_src>
import functools
import math

import jax
import jax.numpy as jnp
from jax import lax
from jax.experimental import pallas as pl
from jax.experimental.pallas import tpu as pltpu

LANES = 128
ACC_SUB = 8            # accumulator block = one f32 vreg (8, 128)
MAX_TILE_ROWS = 2048   # DMA block: (2048, 128) f32 = 1 MiB per input buffer
SUB_ROWS = 512         # compute strip: intermediates stay (512, 128) = 256 KiB
NSLABS = 2             # leading "parallel" grid axis


def _cdiv(a, b):
    return -(-a // b)


def _awl_elementwise(y_hat, y, *, omega, theta, epsilon, alpha, in_kernel):
    """Fused AWL math: ONE exp, ONE log, ONE log1p, ONE reciprocal per element."""
    d = jnp.abs(y - y_hat)
    a_minus_y = alpha - y
    log_t = math.log(theta / epsilon)
    # Merge the two data-dependent powers into a single exp by picking the
    # log-base per element:
    #   branch1 needs (d/omega)^(a-y)   = exp((a-y) * log(d/omega))
    #   branch2 needs (theta/eps)^(a-y) = exp((a-y) * log(theta/eps))
    # Clamp d away from 0 so 0^positive stays exactly 0 (matches jnp.power).
    log_base = jnp.where(d < theta,
                         jnp.log(jnp.maximum(d, 1e-36) * (1.0 / omega)),
                         log_t)
    t = jnp.exp(a_minus_y * log_base)
    log1p_t = jnp.log1p(t)

    # Branch 1 (d < theta)
    loss1 = omega * log1p_t

    # Branch 2 (d >= theta): here t == p == (theta/eps)^(alpha-y), so log1p_t and
    # the reciprocal below are exactly what A and C need.
    if in_kernel:
        r = pl.reciprocal(1.0 + t, approx=True)     # EUP vrcp fast path
        r = r * (2.0 - (1.0 + t) * r)                # one Newton step (VPU has slack)
    else:
        r = 1.0 / (1.0 + t)
    A = (omega / theta) * a_minus_y * t * r
    C = theta * A - omega * log1p_t
    loss2 = A * d - C

    return jnp.where(d < theta, loss1, loss2)


def _awl_kernel(pred_ref, targ_ref, out_ref, *, omega, theta, epsilon, alpha,
                n_valid, tile_rows, sub_rows, steps_per_slab, total_blocks):
    c = pl.program_id(0)   # slab (parallel; 2 TCs on multi-core gens)
    i = pl.program_id(1)   # reduction step within the slab (arbitrary)

    @pl.when(i == 0)
    def _():
        out_ref[...] = jnp.zeros_like(out_ref)

    blk = c * steps_per_slab + i
    n_sub = tile_rows // sub_rows

    loss_fn = functools.partial(_awl_elementwise, omega=omega, theta=theta,
                                epsilon=epsilon, alpha=alpha, in_kernel=True)

    def chunk_loss(s):
        r0 = s * sub_rows
        y_hat = pred_ref[pl.ds(r0, sub_rows), :].astype(jnp.float32)
        y = targ_ref[pl.ds(r0, sub_rows), :].astype(jnp.float32)
        return loss_fn(y_hat, y)

    def fold(loss):
        # Collapse the sub-chunk to one (8, 128) vreg-shaped partial (VPU adds,
        # no cross-lane reduce inside the hot loop).
        return jnp.sum(loss.reshape(sub_rows // ACC_SUB, ACC_SUB, LANES), axis=0)

    acc0 = jnp.zeros((ACC_SUB, LANES), jnp.float32)

    # Common path: every fully-valid block accumulates unmasked.
    @pl.when(blk < total_blocks - 1)
    def _():
        def body(s, acc):
            return acc + fold(chunk_loss(s))
        out_ref[...] += lax.fori_loop(0, n_sub, body, acc0, unroll=True)

    # Tail path: last real block (possibly partial) and any clamp-duplicated
    # trailing blocks mask via the *unclamped* flat element index.
    @pl.when(blk >= total_blocks - 1)
    def _():
        base = blk * (tile_rows * LANES)
        row = lax.broadcasted_iota(jnp.int32, (sub_rows, LANES), 0)
        lane = lax.broadcasted_iota(jnp.int32, (sub_rows, LANES), 1)
        local = row * LANES + lane

        def body(s, acc):
            loss = chunk_loss(s)
            gidx = base + s * (sub_rows * LANES) + local
            return acc + fold(jnp.where(gidx < n_valid, loss, 0.0))
        out_ref[...] += lax.fori_loop(0, n_sub, body, acc0, unroll=True)


def adaptive_wing_loss(pred, target, omega=14.0, theta=0.5, epsilon=1.0, alpha=2.1):
    """Scalar Adaptive Wing Loss matching the PyTorch reference semantics."""
    assert pred.shape == target.shape
    n_elems = int(pred.size)
    # int32 flat-index mask inside the kernel.
    assert 0 < n_elems < 2 ** 31 - MAX_TILE_ROWS * LANES

    it = min(jnp.dtype(pred.dtype).itemsize, jnp.dtype(target.dtype).itemsize)
    pack = max(8, 32 // max(it, 1))      # sublane packing: 8 (f32), 16 (bf16), 32 (i8)
    gran = pack * LANES

    # Row-major flatten in native dtype: a layout no-op; the f32 cast happens
    # in-kernel (no wrapper upcast HBM pass).
    pred_f = jnp.ravel(pred)
    targ_f = jnp.ravel(target)

    n_main = (n_elems // gran) * gran
    tail_sum = jnp.float32(0.0)
    if n_main < n_elems:
        # Rare misaligned remainder (< pack*128 elements): fold it in with plain
        # JAX instead of jnp.pad-ing (and rewriting) the whole input in HBM.
        tail_sum = jnp.sum(_awl_elementwise(
            pred_f[n_main:].astype(jnp.float32),
            targ_f[n_main:].astype(jnp.float32),
            omega=float(omega), theta=float(theta), epsilon=float(epsilon),
            alpha=float(alpha), in_kernel=False))
        pred_f = pred_f[:n_main]
        targ_f = targ_f[:n_main]

    if n_main == 0:
        return tail_sum / jnp.float32(n_elems)

    rows = n_main // LANES               # multiple of `pack` (>= 8) by construction
    pred2d = pred_f.reshape(rows, LANES)
    targ2d = targ_f.reshape(rows, LANES)

    tile_rows = MAX_TILE_ROWS if rows >= MAX_TILE_ROWS else rows  # full dim if small
    sub_rows = SUB_ROWS if tile_rows % SUB_ROWS == 0 else tile_rows

    total_blocks = _cdiv(rows, tile_rows)
    nslabs = NSLABS if total_blocks >= NSLABS else 1
    steps_per_slab = _cdiv(total_blocks, nslabs)

    def in_map(c, i):
        # Clamp so no block *starts* past the array; clamp-duplicated trailing
        # blocks are fully masked in-kernel (unclamped flat index >= n_main).
        return (jnp.minimum(c * steps_per_slab + i, total_blocks - 1), 0)

    kernel = functools.partial(
        _awl_kernel,
        omega=float(omega), theta=float(theta), epsilon=float(epsilon),
        alpha=float(alpha), n_valid=n_main, tile_rows=tile_rows,
        sub_rows=sub_rows, steps_per_slab=steps_per_slab,
        total_blocks=total_blocks,
    )

    partials = pl.pallas_call(
        kernel,
        out_shape=jax.ShapeDtypeStruct((nslabs * ACC_SUB, LANES), jnp.float32),
        grid_spec=pltpu.PrefetchScalarGridSpec(
            num_scalar_prefetch=0,
            grid=(nslabs, steps_per_slab),
            in_specs=[
                pl.BlockSpec((tile_rows, LANES), in_map),
                pl.BlockSpec((tile_rows, LANES), in_map),
            ],
            out_specs=pl.BlockSpec((ACC_SUB, LANES), lambda c, i: (c, 0)),
        ),
        # NOTE: on v7x, pltpu.CORE_PARALLEL on the leading axis would guarantee
        # the 2-TensorCore split; plain "parallel" is kept so the same code also
        # compiles cleanly on single-core v5e/v6e.
        compiler_params=pltpu.CompilerParams(
            dimension_semantics=("parallel", "arbitrary"),
            vmem_limit_bytes=32 * 1024 * 1024,
        ),
    )(pred2d, targ2d)

    return (jnp.sum(partials) + tail_sum) / jnp.float32(n_elems)


def _reference(pred, target, omega=14.0, theta=0.5, epsilon=1.0, alpha=2.1):
    """Direct transcription of the PyTorch formula (for validation)."""
    y = target.astype(jnp.float32)
    y_hat = pred.astype(jnp.float32)
    d = jnp.abs(y - y_hat)
    loss1 = omega * jnp.log(1.0 + jnp.power(d / omega, alpha - y))
    t = theta / epsilon
    p = jnp.power(t, alpha - y)
    A = omega * (1.0 / (1.0 + p)) * (alpha - y) * jnp.power(t, alpha - y - 1.0) / epsilon
    C = theta * A - omega * jnp.log(1.0 + p)
    loss2 = A * d - C
    loss = jnp.where(d < theta, loss1, loss2)
    return jnp.sum(loss) / loss.size


if __name__ == "__main__":
    key = jax.random.PRNGKey(0)
    k1, k2 = jax.random.split(key)
    # Heatmap-like inputs: batch=2, channels=4, spatial 16x16, values in [0, 1]
    pred = jax.random.uniform(k1, (2, 4, 16, 16), dtype=jnp.float32)
    target = jax.random.uniform(k2, (2, 4, 16, 16), dtype=jnp.float32)

    out = adaptive_wing_loss(pred, target)
    out = jax.block_until_ready(out)

    ref = _reference(pred, target)
    assert jnp.allclose(out, ref, rtol=1e-4, atol=1e-6), (out, ref)
    print("KERNEL_OK")
</pallas_src>

<mosaic_0001>
module attributes {stable_mosaic.version = 11 : i64} {
  func.func @_awl_kernel(%arg0: i32, %arg1: i32, %arg2: memref<16x128xf32, #tpu.memory_space<vmem>>, %arg3: memref<16x128xf32, #tpu.memory_space<vmem>>, %arg4: memref<8x128xf32, #tpu.memory_space<vmem>>) attributes {dimension_semantics = [#tpu.dimension_semantics<parallel>, #tpu.dimension_semantics<arbitrary>], iteration_bounds = array<i64: 1, 1>, scalar_prefetch = 0 : i64, scratch_operands = 0 : i64, tpu.core_type = #tpu.core_type<tc>, window_params = [{transform_indices = @transform_0, window_bounds = array<i64: 16, 128>}, {transform_indices = @transform_1, window_bounds = array<i64: 16, 128>}, {transform_indices = @transform_2, window_bounds = array<i64: 8, 128>}]} {
    %c0_i32 = arith.constant 0 : i32
    %0 = arith.cmpi eq, %arg1, %c0_i32 : i32
    %1 = arith.extui %0 : i1 to i32
    %c0_i32_0 = arith.constant 0 : i32
    %2 = arith.cmpi ne, %1, %c0_i32_0 : i32
    scf.if %2 {
      %cst_5 = arith.constant 0.000000e+00 : f32
      %12 = vector.broadcast %cst_5 : f32 to vector<8x128xf32>
      %c0 = arith.constant 0 : index
      %c0_6 = arith.constant 0 : index
      %13 = vector.load %arg4[%c0, %c0_6] : memref<8x128xf32, #tpu.memory_space<vmem>>, vector<8x128xf32>
      tpu.vector_store %arg4[%c0, %c0_6], %12 {strides = array<i32>} : memref<8x128xf32, #tpu.memory_space<vmem>>, vector<8x128xf32>,
    } else {
    }
    %c1_i32 = arith.constant 1 : i32
    %3 = arith.muli %arg0, %c1_i32 : i32
    %4 = arith.addi %3, %arg1 : i32
    %cst = arith.constant 0.000000e+00 : f32
    %5 = vector.broadcast %cst : f32 to vector<8x128xf32>
    %c0_i32_1 = arith.constant 0 : i32
    %6 = arith.cmpi slt, %4, %c0_i32_1 : i32
    %7 = arith.extui %6 : i1 to i32
    %c0_i32_2 = arith.constant 0 : i32
    %8 = arith.cmpi ne, %7, %c0_i32_2 : i32
    scf.if %8 {
      %c0 = arith.constant 0 : index
      %c0_5 = arith.constant 0 : index
      %12 = vector.load %arg4[%c0, %c0_5] : memref<8x128xf32, #tpu.memory_space<vmem>>, vector<8x128xf32>
      %c0_i32_6 = arith.constant 0 : i32
      %c16_i32 = arith.constant 16 : i32
      %13 = arith.muli %c0_i32_6, %c16_i32 : i32
      %14 = arith.index_cast %13 : i32 to index
      %c0_7 = arith.constant 0 : index
      %15 = vector.load %arg2[%14, %c0_7] : memref<16x128xf32, #tpu.memory_space<vmem>>, vector<16x128xf32>
      %16 = arith.index_cast %13 : i32 to index
      %c0_8 = arith.constant 0 : index
      %17 = vector.load %arg3[%16, %c0_8] : memref<16x128xf32, #tpu.memory_space<vmem>>, vector<16x128xf32>
      %18 = arith.subf %17, %15 : vector<16x128xf32>
      %19 = math.absf %18 : vector<16x128xf32>
      %cst_9 = arith.constant 2.100000e+00 : f32
      %20 = vector.broadcast %cst_9 : f32 to vector<16x128xf32>
      %21 = arith.subf %20, %17 : vector<16x128xf32>
      %cst_10 = arith.constant 5.000000e-01 : f32
      %22 = vector.broadcast %cst_10 : f32 to vector<16x128xf32>
      %23 = arith.cmpf olt, %19, %22 : vector<16x128xf32>
      %cst_11 = arith.constant 1.000000e-36 : f32
      %24 = vector.broadcast %cst_11 : f32 to vector<16x128xf32>
      %25 = arith.maximumf %19, %24 : vector<16x128xf32>
      %cst_12 = arith.constant 0.0714285746 : f32
      %26 = vector.broadcast %cst_12 : f32 to vector<16x128xf32>
      %27 = arith.mulf %25, %26 : vector<16x128xf32>
      %28 = math.log %27 : vector<16x128xf32>
      %cst_13 = arith.constant -0.693147182 : f32
      %29 = vector.broadcast %cst_13 : f32 to vector<16x128xf32>
      %30 = arith.select %23, %28, %29 : vector<16x128xi1>, vector<16x128xf32>
      %31 = arith.mulf %21, %30 : vector<16x128xf32>
      %32 = math.exp %31 : vector<16x128xf32>
      %33 = math.log1p %32 : vector<16x128xf32>
      %cst_14 = arith.constant 1.400000e+01 : f32
      %34 = vector.broadcast %cst_14 : f32 to vector<16x128xf32>
      %35 = arith.mulf %34, %33 : vector<16x128xf32>
      %cst_15 = arith.constant 1.000000e+00 : f32
      %36 = vector.broadcast %cst_15 : f32 to vector<16x128xf32>
      %37 = arith.addf %36, %32 : vector<16x128xf32>
      %38 = tpu.reciprocal %37 {approx = true} : vector<16x128xf32> -> vector<16x128xf32>
      %cst_16 = arith.constant 1.000000e+00 : f32
      %39 = vector.broadcast %cst_16 : f32 to vector<16x128xf32>
      %40 = arith.addf %39, %32 : vector<16x128xf32>
      %41 = arith.mulf %40, %38 : vector<16x128xf32>
      %cst_17 = arith.constant 2.000000e+00 : f32
      %42 = vector.broadcast %cst_17 : f32 to vector<16x128xf32>
      %43 = arith.subf %42, %41 : vector<16x128xf32>
      %44 = arith.mulf %38, %43 : vector<16x128xf32>
      %cst_18 = arith.constant 2.800000e+01 : f32
      %45 = vector.broadcast %cst_18 : f32 to vector<16x128xf32>
      %46 = arith.mulf %45, %21 : vector<16x128xf32>
      %47 = arith.mulf %46, %32 : vector<16x128xf32>
      %48 = arith.mulf %47, %44 : vector<16x128xf32>
      %cst_19 = arith.constant 5.000000e-01 : f32
      %49 = vector.broadcast %cst_19 : f32 to vector<16x128xf32>
      %50 = arith.mulf %49, %48 : vector<16x128xf32>
      %cst_20 = arith.constant 1.400000e+01 : f32
      %51 = vector.broadcast %cst_20 : f32 to vector<16x128xf32>
      %52 = arith.mulf %51, %33 : vector<16x128xf32>
      %53 = arith.subf %50, %52 : vector<16x128xf32>
      %54 = arith.mulf %48, %19 : vector<16x128xf32>
      %55 = arith.subf %54, %53 : vector<16x128xf32>
      %cst_21 = arith.constant 5.000000e-01 : f32
      %56 = vector.broadcast %cst_21 : f32 to vector<16x128xf32>
      %57 = arith.cmpf olt, %19, %56 : vector<16x128xf32>
      %58 = arith.select %57, %35, %55 : vector<16x128xi1>, vector<16x128xf32>
      %59 = vector.shape_cast %58 : vector<16x128xf32> to vector<2x8x128xf32>
      %cst_22 = arith.constant dense<0.000000e+00> : vector<8x128xf32>
      %60 = vector.multi_reduction <add>, %59, %cst_22 [0] : vector<2x8x128xf32> to vector<8x128xf32>
      %61 = arith.addf %5, %60 : vector<8x128xf32>
      %c1_i32_23 = arith.constant 1 : i32
      %62 = arith.addf %12, %61 : vector<8x128xf32>
      %c0_24 = arith.constant 0 : index
      %c0_25 = arith.constant 0 : index
      %63 = vector.load %arg4[%c0_24, %c0_25] : memref<8x128xf32, #tpu.memory_space<vmem>>, vector<8x128xf32>
      tpu.vector_store %arg4[%c0_24, %c0_25], %62 {strides = array<i32>} : memref<8x128xf32, #tpu.memory_space<vmem>>, vector<8x128xf32>,
    } else {
    }
    %c0_i32_3 = arith.constant 0 : i32
    %9 = arith.cmpi sge, %4, %c0_i32_3 : i32
    %10 = arith.extui %9 : i1 to i32
    %c0_i32_4 = arith.constant 0 : i32
    %11 = arith.cmpi ne, %10, %c0_i32_4 : i32
    scf.if %11 {
      %c2048_i32 = arith.constant 2048 : i32
      %12 = arith.muli %4, %c2048_i32 : i32
      %13 = tpu.iota {dimensions = array<i32: 0>} : vector<16x128xi32>
      %14 = tpu.iota {dimensions = array<i32: 1>} : vector<16x128xi32>
      %c128_i32 = arith.constant 128 : i32
      %15 = vector.broadcast %c128_i32 : i32 to vector<16x128xi32>
      %16 = arith.muli %13, %15 : vector<16x128xi32>
      %17 = arith.addi %16, %14 : vector<16x128xi32>
      %c0 = arith.constant 0 : index
      %c0_5 = arith.constant 0 : index
      %18 = vector.load %arg4[%c0, %c0_5] : memref<8x128xf32, #tpu.memory_space<vmem>>, vector<8x128xf32>
      %c0_i32_6 = arith.constant 0 : i32
      %c16_i32 = arith.constant 16 : i32
      %19 = arith.muli %c0_i32_6, %c16_i32 : i32
      %20 = arith.index_cast %19 : i32 to index
      %c0_7 = arith.constant 0 : index
      %21 = vector.load %arg2[%20, %c0_7] : memref<16x128xf32, #tpu.memory_space<vmem>>, vector<16x128xf32>
      %22 = arith.index_cast %19 : i32 to index
      %c0_8 = arith.constant 0 : index
      %23 = vector.load %arg3[%22, %c0_8] : memref<16x128xf32, #tpu.memory_space<vmem>>, vector<16x128xf32>
      %24 = arith.subf %23, %21 : vector<16x128xf32>
      %25 = math.absf %24 : vector<16x128xf32>
      %cst_9 = arith.constant 2.100000e+00 : f32
      %26 = vector.broadcast %cst_9 : f32 to vector<16x128xf32>
      %27 = arith.subf %26, %23 : vector<16x128xf32>
      %cst_10 = arith.constant 5.000000e-01 : f32
      %28 = vector.broadcast %cst_10 : f32 to vector<16x128xf32>
      %29 = arith.cmpf olt, %25, %28 : vector<16x128xf32>
      %cst_11 = arith.constant 1.000000e-36 : f32
      %30 = vector.broadcast %cst_11 : f32 to vector<16x128xf32>
      %31 = arith.maximumf %25, %30 : vector<16x128xf32>
      %cst_12 = arith.constant 0.0714285746 : f32
      %32 = vector.broadcast %cst_12 : f32 to vector<16x128xf32>
      %33 = arith.mulf %31, %32 : vector<16x128xf32>
      %34 = math.log %33 : vector<16x128xf32>
      %cst_13 = arith.constant -0.693147182 : f32
      %35 = vector.broadcast %cst_13 : f32 to vector<16x128xf32>
      %36 = arith.select %29, %34, %35 : vector<16x128xi1>, vector<16x128xf32>
      %37 = arith.mulf %27, %36 : vector<16x128xf32>
      %38 = math.exp %37 : vector<16x128xf32>
      %39 = math.log1p %38 : vector<16x128xf32>
      %cst_14 = arith.constant 1.400000e+01 : f32
      %40 = vector.broadcast %cst_14 : f32 to vector<16x128xf32>
      %41 = arith.mulf %40, %39 : vector<16x128xf32>
      %cst_15 = arith.constant 1.000000e+00 : f32
      %42 = vector.broadcast %cst_15 : f32 to vector<16x128xf32>
      %43 = arith.addf %42, %38 : vector<16x128xf32>
      %44 = tpu.reciprocal %43 {approx = true} : vector<16x128xf32> -> vector<16x128xf32>
      %cst_16 = arith.constant 1.000000e+00 : f32
      %45 = vector.broadcast %cst_16 : f32 to vector<16x128xf32>
      %46 = arith.addf %45, %38 : vector<16x128xf32>
      %47 = arith.mulf %46, %44 : vector<16x128xf32>
      %cst_17 = arith.constant 2.000000e+00 : f32
      %48 = vector.broadcast %cst_17 : f32 to vector<16x128xf32>
      %49 = arith.subf %48, %47 : vector<16x128xf32>
      %50 = arith.mulf %44, %49 : vector<16x128xf32>
      %cst_18 = arith.constant 2.800000e+01 : f32
      %51 = vector.broadcast %cst_18 : f32 to vector<16x128xf32>
      %52 = arith.mulf %51, %27 : vector<16x128xf32>
      %53 = arith.mulf %52, %38 : vector<16x128xf32>
      %54 = arith.mulf %53, %50 : vector<16x128xf32>
      %cst_19 = arith.constant 5.000000e-01 : f32
      %55 = vector.broadcast %cst_19 : f32 to vector<16x128xf32>
      %56 = arith.mulf %55, %54 : vector<16x128xf32>
      %cst_20 = arith.constant 1.400000e+01 : f32
      %57 = vector.broadcast %cst_20 : f32 to vector<16x128xf32>
      %58 = arith.mulf %57, %39 : vector<16x128xf32>
      %59 = arith.subf %56, %58 : vector<16x128xf32>
      %60 = arith.mulf %54, %25 : vector<16x128xf32>
      %61 = arith.subf %60, %59 : vector<16x128xf32>
      %cst_21 = arith.constant 5.000000e-01 : f32
      %62 = vector.broadcast %cst_21 : f32 to vector<16x128xf32>
      %63 = arith.cmpf olt, %25, %62 : vector<16x128xf32>
      %64 = arith.select %63, %41, %61 : vector<16x128xi1>, vector<16x128xf32>
      %c2048_i32_22 = arith.constant 2048 : i32
      %65 = arith.muli %c0_i32_6, %c2048_i32_22 : i32
      %66 = arith.addi %12, %65 : i32
      %67 = vector.broadcast %66 : i32 to vector<16x128xi32>
      %68 = arith.addi %67, %17 : vector<16x128xi32>
      %c2048_i32_23 = arith.constant 2048 : i32
      %69 = vector.broadcast %c2048_i32_23 : i32 to vector<16x128xi32>
      %70 = arith.cmpi slt, %68, %69 : vector<16x128xi32>
      %cst_24 = arith.constant 0.000000e+00 : f32
      %71 = vector.broadcast %cst_24 : f32 to vector<16x128xf32>
      %72 = arith.select %70, %64, %71 : vector<16x128xi1>, vector<16x128xf32>
      %73 = vector.shape_cast %72 : vector<16x128xf32> to vector<2x8x128xf32>
      %cst_25 = arith.constant dense<0.000000e+00> : vector<8x128xf32>
      %74 = vector.multi_reduction <add>, %73, %cst_25 [0] : vector<2x8x128xf32> to vector<8x128xf32>
      %75 = arith.addf %5, %74 : vector<8x128xf32>
      %c1_i32_26 = arith.constant 1 : i32
      %76 = arith.addf %18, %75 : vector<8x128xf32>
      %c0_27 = arith.constant 0 : index
      %c0_28 = arith.constant 0 : index
      %77 = vector.load %arg4[%c0_27, %c0_28] : memref<8x128xf32, #tpu.memory_space<vmem>>, vector<8x128xf32>
      tpu.vector_store %arg4[%c0_27, %c0_28], %76 {strides = array<i32>} : memref<8x128xf32, #tpu.memory_space<vmem>>, vector<8x128xf32>,
    } else {
    }
    return
  }
  func.func @transform_0(%arg0: i32, %arg1: i32) -> (i32, i32) {
    %c1_i32 = arith.constant 1 : i32
    %0 = arith.muli %arg0, %c1_i32 : i32
    %1 = arith.addi %0, %arg1 : i32
    %c0_i32 = arith.constant 0 : i32
    %2 = arith.minsi %1, %c0_i32 : i32
    %c0_i32_0 = arith.constant 0 : i32
    %c0_i32_1 = arith.constant 0 : i32
    return %2, %c0_i32_0 : i32, i32
  }
  func.func @transform_1(%arg0: i32, %arg1: i32) -> (i32, i32) {
    %c1_i32 = arith.constant 1 : i32
    %0 = arith.muli %arg0, %c1_i32 : i32
    %1 = arith.addi %0, %arg1 : i32
    %c0_i32 = arith.constant 0 : i32
    %2 = arith.minsi %1, %c0_i32 : i32
    %c0_i32_0 = arith.constant 0 : i32
    %c0_i32_1 = arith.constant 0 : i32
    return %2, %c0_i32_0 : i32, i32
  }
  func.func @transform_2(%arg0: i32, %arg1: i32) -> (i32, i32) {
    %c0_i32 = arith.constant 0 : i32
    %c0_i32_0 = arith.constant 0 : i32
    return %arg0, %c0_i32 : i32, i32
  }
}

</mosaic_0001>

<llo_original>
// kernel: tpu_custom_call.1
$region0: #{tpu_custom_call.1}
  #allocation0 [shape = 'u32[]', space=smem, size = 0x4, offset = 0x4, fixed_abs, tag = 'smem constant byte address 0x4 - core index']
  #allocation1 [shape = 'u32[144,128]{1,0:T(1,128)}', space=vmem, size = 0x12000, scoped, tag = 'internal scratch']
  %s0 = inlined_call_operand.hbm [shape: f32[16,128], index: 0, kind: input, shape index: {}]
  %s1 = inlined_call_operand.hbm [shape: f32[16,128], index: 1, kind: input, shape index: {}]
  %s2 = inlined_call_operand.hbm [shape: f32[8,128], index: 2, kind: output, shape index: {}]
  %s3 = sld [smem:[#allocation0]]
  $region38: #{tpu_custom_call.1} parent=0
    _
  %s5 = ssub.s32 1, %s3
  %s6 = scalar_select 0, %s5, %s3
  $region1: #{tpu_custom_call.1} parent=0
    #allocation2 [shape = 'u8[8192]{0}', space=vmem, size = 0x2000, scoped, tag = 'input window, operand 0, single buffered']
    #allocation3 [shape = 's32[1]{0}', space=sflag, size = 0x4, scoped, tag = 'scoped memory for tpu_custom_call.1']
    #allocation4 [shape = 's32[1]{0}', space=sflag, size = 0x4, scoped, tag = 'scoped memory for tpu_custom_call.1']
    #allocation5 [shape = 'u8[8192]{0}', space=vmem, size = 0x2000, scoped, tag = 'input window, operand 1, single buffered']
    #allocation6 [shape = 's32[1]{0}', space=sflag, size = 0x4, scoped, tag = 'scoped memory for tpu_custom_call.1']
    #allocation7 [shape = 'u8[4096]{0}', space=vmem, size = 0x1000, scoped, tag = 'output window, operand 0, single buffered']
    %7 = vsyncpa [#allocation3], 0
    %8 = vsyncpa [#allocation6], 0
    %9 = vsyncpa [#allocation4], 0
    // Predicated region
    $region2: #{tpu_custom_call.1} parent=1 // pred_check
      _
    $region3: #{tpu_custom_call.1} parent=1 // pred_check_branch
      %11 = sbr.rel (0) target = $region5
    $region4: #{tpu_custom_call.1} parent=1 // pred_region
      %s12 = sadd.s32 0, 0
      %p13 = scmp.lt.s32.totalorder %s12, 0
      %s14 = scalar_select %p13, %s12, 0
      %s15 = smul.u32 2, %s14
      %s17 = ssub.s32 256, 256
      %18 = vsyncadd [#allocation3], %s17
      %s19 = smul.addr %s15, 128
      %s20 = scalar_lea.hbm %s0, %s19
      %s21 = sshll.u32 [#allocation2], 4
      %s22 = int_to_ptr.vmem [resolvable:$true] %s21
      %27 = dma.hbm_to_vmem [thread:$0]  %s20, 256, %s22, [#allocation3], 128, 128, 8
    $region5: #{tpu_custom_call.1} parent=1 // pred_fallthru
      _
    // Predicated region
    $region6: #{tpu_custom_call.1} parent=1 // pred_check
      _
    $region7: #{tpu_custom_call.1} parent=1 // pred_check_branch
      %29 = sbr.rel (0) target = $region9
    $region8: #{tpu_custom_call.1} parent=1 // pred_region
      %s30 = sadd.s32 0, 0
      %p31 = scmp.lt.s32.totalorder %s30, 0
      %s32 = scalar_select %p31, %s30, 0
      %s33 = smul.u32 2, %s32
      %s35 = ssub.s32 256, 256
      %36 = vsyncadd [#allocation6], %s35
      %s37 = smul.addr %s33, 128
      %s38 = scalar_lea.hbm %s1, %s37
      %s39 = sshll.u32 [#allocation5], 4
      %s40 = int_to_ptr.vmem [resolvable:$true] %s39
      %45 = dma.hbm_to_vmem [thread:$0]  %s38, 256, %s40, [#allocation6], 128, 128, 8
    $region9: #{tpu_custom_call.1} parent=1 // pred_fallthru
      _
    // Predicated region
    $region10: #{tpu_custom_call.1} parent=1 // pred_check
      _
    $region11: #{tpu_custom_call.1} parent=1 // pred_check_branch
      %47 = sbr.rel (0) target = $region13
    $region12: #{tpu_custom_call.1} parent=1 // pred_region
      %48 = dma.done [#allocation3], 256
    $region13: #{tpu_custom_call.1} parent=1 // pred_fallthru
      _
    // Predicated region
    $region14: #{tpu_custom_call.1} parent=1 // pred_check
      _
    $region15: #{tpu_custom_call.1} parent=1 // pred_check_branch
      %50 = sbr.rel (0) target = $region17
    $region16: #{tpu_custom_call.1} parent=1 // pred_region
      %51 = dma.done [#allocation6], 256
    $region17: #{tpu_custom_call.1} parent=1 // pred_fallthru
      _
    %s52 = sadd.s32 0, 0
    %p53 = scmp.lt.s32.totalorder %s52, 0
    %s54 = scalar_select %p53, %s52, 0
    %s55 = smul.u32 2, %s54
    %s56 = sadd.s32 0, 0
    %p57 = scmp.lt.s32.totalorder %s56, 0
    %s58 = scalar_select %p57, %s56, 0
    %s59 = smul.u32 2, %s58
    %p60 = scmp.eq.s32.totalorder 0, 0
    // Predicated region
    $region18: #{tpu_custom_call.1} parent=1 // pred_check
      %p61 = pneg %p60
    $region19: #{tpu_custom_call.1} parent=1 // pred_check_branch
      %63 = sbr.rel (%p61) target = $region21
    $region20: #{tpu_custom_call.1} parent=1 // pred_region
      %64 = vst [vmem:[#allocation7] sm:$0xff] 0.0
    $region21: #{tpu_custom_call.1} parent=1 // pred_fallthru
      _
    %s65 = sadd.s32 0, 0
    %p66 = scmp.lt.s32.totalorder %s65, 0
    // Predicated region
    $region22: #{tpu_custom_call.1} parent=1 // pred_check
      %p67 = pneg %p66
    $region23: #{tpu_custom_call.1} parent=1 // pred_check_branch
      %69 = sbr.rel (%p67) target = $region25
    $region24: #{tpu_custom_call.1} parent=1 // pred_region
      %v70 = vld [vmem:[#allocation7] sm:$0xff]
      %v71 = vld [vmem:[#allocation2] sm:$0xff]
      %v72 = vld [vmem:[#allocation2 + $0x8] sm:$0xff]
      %v73 = vld [vmem:[#allocation5] sm:$0xff]
      %v74 = vld [vmem:[#allocation5 + $0x8] sm:$0xff]
      %v75 = vsub.f32 %v73, %v71
      %v76 = vsub.f32 %v74, %v72
      %v77 = vand.u32 2147483647, %v75
      %v78 = vand.u32 2147483647, %v76
      %v79 = vsub.f32 2.1, %v73
      %v80 = vsub.f32 2.1, %v74
      %vm81 = vcmp.lt.f32.partialorder %v77, 0.5
      %vm82 = vcmp.lt.f32.partialorder %v78, 0.5
      %v83 = vmax.f32 %v77, 1e-36
      %v84 = vmax.f32 %v78, 1e-36
      %v85 = vmul.f32 %v83, 0.071428575
      %v86 = vmul.f32 %v84, 0.071428575
      %v87 = vlog2.pop %v85
      %v88 = vmul.f32 %v87, 0.6931472
      %v89 = vlog2.pop %v86
      %v90 = vmul.f32 %v89, 0.6931472
      %v91 = vsel %vm81, %v88, -0.6931472
      %v92 = vsel %vm82, %v90, -0.6931472
      %v93 = vmul.f32 %v79, %v91
      %v94 = vmul.f32 %v80, %v92
      %v95 = vmul.f32 %v93, 1.442695
      %v96 = vpow.pop %v95
      %v97 = vmul.f32 %v94, 1.442695
      %v98 = vpow.pop %v97
      %v99 = vadd.f32 %v96, 1.0
      %v100 = vlog2.pop %v99
      %v101 = vmul.f32 %v100, 0.6931472
      %v102 = vmul.f32 -0.5, %v96
      %v103 = vadd.f32 %v102, 1.0
      %v104 = vmul.f32 %v103, %v96
      %v105 = vand.u32 2147483647, %v96
      %vm106 = vcmp.lt.f32.partialorder %v105, 0.0004427343
      %v107 = vsel %vm106, %v104, %v101
      %v108 = vadd.f32 %v98, 1.0
      %v109 = vlog2.pop %v108
      %v110 = vmul.f32 %v109, 0.6931472
      %v111 = vmul.f32 -0.5, %v98
      %v112 = vadd.f32 %v111, 1.0
      %v113 = vmul.f32 %v112, %v98
      %v114 = vand.u32 2147483647, %v98
      %vm115 = vcmp.lt.f32.partialorder %v114, 0.0004427343
      %v116 = vsel %vm115, %v113, %v110
      %v117 = vmul.f32 %v107, 14.0
      %v118 = vmul.f32 %v116, 14.0
      %v119 = vadd.f32 %v96, 1.0
      %v120 = vadd.f32 %v98, 1.0
      %v121 = vrcp.pop %v119
      %v122 = vrcp.pop %v120
      %v123 = vmul.f32 %v119, %v121
      %v124 = vmul.f32 %v120, %v122
      %v125 = vsub.f32 2.0, %v123
      %v126 = vsub.f32 2.0, %v124
      %v127 = vmul.f32 %v121, %v125
      %v128 = vmul.f32 %v122, %v126
      %v129 = vmul.f32 %v79, 28.0
      %v130 = vmul.f32 %v80, 28.0
      %v131 = vmul.f32 %v129, %v96
      %v132 = vmul.f32 %v130, %v98
      %v133 = vmul.f32 %v131, %v127
      %v134 = vmul.f32 %v132, %v128
      %v135 = vmul.f32 %v133, 0.5
      %v136 = vmul.f32 %v134, 0.5
      %v137 = vsub.f32 %v135, %v117
      %v138 = vsub.f32 %v136, %v118
      %v139 = vmul.f32 %v133, %v77
      %v140 = vmul.f32 %v134, %v78
      %v141 = vsub.f32 %v139, %v137
      %v142 = vsub.f32 %v140, %v138
      %v143 = vsel %vm81, %v117, %v141
      %v144 = vsel %vm82, %v118, %v142
      %v145 = vadd.f32 %v143, %v144
      %v146 = vadd.f32 %v145, 0.0
      %v147 = vadd.f32 %v70, %v146
      %148 = vst [vmem:[#allocation7] sm:$0xff] %v147
    $region25: #{tpu_custom_call.1} parent=1 // pred_fallthru
      _
    %p149 = scmp.ge.s32.totalorder %s65, 0
    // Predicated region
    $region26: #{tpu_custom_call.1} parent=1 // pred_check
      %p150 = pneg %p149
    $region27: #{tpu_custom_call.1} parent=1 // pred_check_branch
      %152 = sbr.rel (%p150) target = $region29
    $region28: #{tpu_custom_call.1} parent=1 // pred_region
      %s153 = smul.u32 %s65, 2048
      %v154 = vlaneseq
      %v155 = vshrl.u32 %v154, 7
      %v156 = vadd.s32 %v155, 8
      %v157 = vlaneseq
      %v158 = vand.u32 %v157, 127
      %v159 = vmul.u32 %v155, 128
      %v160 = vmul.u32 %v156, 128
      %v161 = vadd.s32 %v159, %v158
      %v162 = vadd.s32 %v160, %v158
      %v163 = vld [vmem:[#allocation7] sm:$0xff]
      %v164 = vld [vmem:[#allocation2] sm:$0xff]
      %v165 = vld [vmem:[#allocation2 + $0x8] sm:$0xff]
      %v166 = vld [vmem:[#allocation5] sm:$0xff]
      %v167 = vld [vmem:[#allocation5 + $0x8] sm:$0xff]
      %v168 = vsub.f32 %v166, %v164
      %v169 = vsub.f32 %v167, %v165
      %v170 = vand.u32 2147483647, %v168
      %v171 = vand.u32 2147483647, %v169
      %v172 = vsub.f32 2.1, %v166
      %v173 = vsub.f32 2.1, %v167
      %vm174 = vcmp.lt.f32.partialorder %v170, 0.5
      %vm175 = vcmp.lt.f32.partialorder %v171, 0.5
      %v176 = vmax.f32 %v170, 1e-36
      %v177 = vmax.f32 %v171, 1e-36
      %v178 = vmul.f32 %v176, 0.071428575
      %v179 = vmul.f32 %v177, 0.071428575
      %v180 = vlog2.pop %v178
      %v181 = vmul.f32 %v180, 0.6931472
      %v182 = vlog2.pop %v179
      %v183 = vmul.f32 %v182, 0.6931472
      %v184 = vsel %vm174, %v181, -0.6931472
      %v185 = vsel %vm175, %v183, -0.6931472
      %v186 = vmul.f32 %v172, %v184
      %v187 = vmul.f32 %v173, %v185
      %v188 = vmul.f32 %v186, 1.442695
      %v189 = vpow.pop %v188
      %v190 = vmul.f32 %v187, 1.442695
      %v191 = vpow.pop %v190
      %v192 = vadd.f32 %v189, 1.0
      %v193 = vlog2.pop %v192
      %v194 = vmul.f32 %v193, 0.6931472
      %v195 = vmul.f32 -0.5, %v189
      %v196 = vadd.f32 %v195, 1.0
      %v197 = vmul.f32 %v196, %v189
      %v198 = vand.u32 2147483647, %v189
      %vm199 = vcmp.lt.f32.partialorder %v198, 0.0004427343
      %v200 = vsel %vm199, %v197, %v194
      %v201 = vadd.f32 %v191, 1.0
      %v202 = vlog2.pop %v201
      %v203 = vmul.f32 %v202, 0.6931472
      %v204 = vmul.f32 -0.5, %v191
      %v205 = vadd.f32 %v204, 1.0
      %v206 = vmul.f32 %v205, %v191
      %v207 = vand.u32 2147483647, %v191
      %vm208 = vcmp.lt.f32.partialorder %v207, 0.0004427343
      %v209 = vsel %vm208, %v206, %v203
      %v210 = vmul.f32 %v200, 14.0
      %v211 = vmul.f32 %v209, 14.0
      %v212 = vadd.f32 %v189, 1.0
      %v213 = vadd.f32 %v191, 1.0
      %v214 = vrcp.pop %v212
      %v215 = vrcp.pop %v213
      %v216 = vmul.f32 %v212, %v214
      %v217 = vmul.f32 %v213, %v215
      %v218 = vsub.f32 2.0, %v216
      %v219 = vsub.f32 2.0, %v217
      %v220 = vmul.f32 %v214, %v218
      %v221 = vmul.f32 %v215, %v219
      %v222 = vmul.f32 %v172, 28.0
      %v223 = vmul.f32 %v173, 28.0
      %v224 = vmul.f32 %v222, %v189
      %v225 = vmul.f32 %v223, %v191
      %v226 = vmul.f32 %v224, %v220
      %v227 = vmul.f32 %v225, %v221
      %v228 = vmul.f32 %v226, 0.5
      %v229 = vmul.f32 %v227, 0.5
      %v230 = vsub.f32 %v228, %v210
      %v231 = vsub.f32 %v229, %v211
      %v232 = vmul.f32 %v226, %v170
      %v233 = vmul.f32 %v227, %v171
      %v234 = vsub.f32 %v232, %v230
      %v235 = vsub.f32 %v233, %v231
      %v236 = vsel %vm174, %v210, %v234
      %v237 = vsel %vm175, %v211, %v235
      %v238 = vstv %s153
      %v239 = vadd.s32 %v238, %v161
      %v240 = vadd.s32 %v238, %v162
      %vm241 = vcmp.lt.s32.totalorder %v239, 2048
      %vm242 = vcmp.lt.s32.totalorder %v240, 2048
      %v243 = vsel %vm241, %v236, 0.0
      %v244 = vsel %vm242, %v237, 0.0
      %v245 = vadd.f32 %v243, %v244
      %v246 = vadd.f32 %v245, 0.0
      %v247 = vadd.f32 %v163, %v246
      %248 = vst [vmem:[#allocation7] sm:$0xff] %v247
    $region29: #{tpu_custom_call.1} parent=1 // pred_fallthru
      _
    // Predicated region
    $region30: #{tpu_custom_call.1} parent=1 // pred_check
      _
    $region31: #{tpu_custom_call.1} parent=1 // pred_check_branch
      %250 = sbr.rel (0) target = $region33
    $region32: #{tpu_custom_call.1} parent=1 // pred_region
      %s252 = ssub.s32 128, 128
      %253 = vsyncadd [#allocation4], %s252
      %s255 = sshll.u32 [#allocation7], 4
      %s256 = int_to_ptr.vmem [resolvable:$true] %s255
      %258 = dma.vmem_to_hbm [thread:$0]  %s256, 128, %s2, [#allocation4]
    $region33: #{tpu_custom_call.1} parent=1 // pred_fallthru
      _
    // Predicated region
    $region34: #{tpu_custom_call.1} parent=1 // pred_check
      _
    $region35: #{tpu_custom_call.1} parent=1 // pred_check_branch
      %260 = sbr.rel (0) target = $region37
    $region36: #{tpu_custom_call.1} parent=1 // pred_region
      %261 = dma.done [#allocation4], 128
    $region37: #{tpu_custom_call.1} parent=1 // pred_fallthru
      _
    %262 = vsyncpa [#allocation3], 1
    %263 = vsyncpa [#allocation6], 1
    %264 = vsyncpa [#allocation4], 1

</llo_original>
